<compile_context>
chip_gen: v7x
topology: tpu7x:2x2x1
jax: 0.10.0
libtpu: 0.0.40
codegen_flags: <defaults>
</compile_context>

<pallas_src>
import numpy as np

import jax
import jax.numpy as jnp
from jax.experimental import pallas as pl
from jax.experimental.pallas import tpu as pltpu


# ----------------------------------------------------------------------------
# Pallas kernel: (tm, Kp) @ (Kp, Ep) + bias(1, Ep) -> (tm, Ep)
#   bf16 inputs, f32 MXU accumulation, full weight resident in VMEM,
#   single K step (no accumulator scratch, no init/finalize phases).
# ----------------------------------------------------------------------------
def _patch_proj_kernel(x_ref, w_ref, b_ref, o_ref):
    acc = jnp.dot(x_ref[...], w_ref[...], preferred_element_type=jnp.float32)
    o_ref[...] = (acc + b_ref[...]).astype(o_ref.dtype)


def _round_up(v, m):
    return ((v + m - 1) // m) * m


def _select_tm(M, Kp, Ep, budget_bytes=20 * 1024 * 1024):
    """Pick the M-tile: multiple of 8, capped at 512, fits a ~20 MiB budget."""
    # Resident weight (assume double-buffered by the pipeline) + bias.
    fixed = 2 * Kp * Ep * 2 + Ep * 4
    # Per-output-row cost: bf16 x tile (2 bufs) + f32 out tile (2 bufs).
    per_row = 2 * Kp * 2 + 2 * Ep * 4
    avail = max(budget_bytes - fixed, 8 * per_row)
    tm_cap = (avail // per_row // 8) * 8
    tm = min(512, _round_up(M, 8), max(8, tm_cap))
    return max(8, tm)


def _patch_proj(patches, w_bf, b_f32, E):
    """patches: (M, K) f32; w_bf: (Kp, Ep) bf16 (pre-padded); b_f32: (1, Ep).

    Returns (M, E) f32.
    """
    M, K = patches.shape
    Kp, Ep = w_bf.shape

    tm = _select_tm(M, Kp, Ep)
    Mp = _round_up(M, tm)

    # Pad rows/K of the activations and cast to bf16 (XLA fuses pad+cast with
    # the preceding patch-extraction transpose).
    # TODO(synk): fuse the patch-extraction transpose + cast into the Pallas
    # input DMA (allow_input_fusion / Element-indexed BlockSpec) to avoid the
    # extra HBM round trip of the (M, K) activation slab.
    x_bf = jnp.pad(patches, ((0, Mp - M), (0, Kp - K))).astype(jnp.bfloat16)

    out = pl.pallas_call(
        _patch_proj_kernel,
        out_shape=jax.ShapeDtypeStruct((Mp, Ep), jnp.float32),
        grid_spec=pltpu.PrefetchScalarGridSpec(
            num_scalar_prefetch=0,
            grid=(Mp // tm,),
            in_specs=[
                pl.BlockSpec((tm, Kp), lambda i: (i, 0)),
                pl.BlockSpec((Kp, Ep), lambda i: (0, 0)),   # weight: VMEM-resident
                pl.BlockSpec((1, Ep), lambda i: (0, 0)),    # bias:   VMEM-resident
            ],
            out_specs=pl.BlockSpec((tm, Ep), lambda i: (i, 0)),
        ),
        compiler_params=pltpu.CompilerParams(
            dimension_semantics=("parallel",),          # megacore shards M on v7x
            vmem_limit_bytes=32 * 1024 * 1024,          # explicit: safe on v5e..v7x
        ),
    )(x_bf, w_bf, b_f32)

    return out[:M, :E]


# ----------------------------------------------------------------------------
# PatchEmbed3D backbone (Conv3d with kernel == stride, as a patch GEMM)
# ----------------------------------------------------------------------------
def _patch_embed_tokens(x, w_bf, b_f32, E, *, patch_size, tubelet_size):
    """
    x:     (B, C, T, H, W)  NCTHW, as in the PyTorch module
    w_bf:  (Kp, Ep) pre-padded bf16 Conv3d weight, K = C*tubelet*patch*patch
    b_f32: (1, Ep) pre-padded f32 bias
    returns (B, N, E) f32
    """
    B, C, T, H, W = x.shape
    kt, kp = tubelet_size, patch_size
    Tp, Hp, Wp = T // kt, H // kp, W // kp
    N = Tp * Hp * Wp
    K = C * kt * kp * kp

    # Patch extraction in (c, kt, kh, kw) order to match the Conv3d weight.
    xr = x.reshape(B, C, Tp, kt, Hp, kp, Wp, kp)
    xr = jnp.transpose(xr, (0, 2, 4, 6, 1, 3, 5, 7))  # (B,Tp,Hp,Wp,C,kt,kp,kp)
    patches = xr.reshape(B * N, K)

    out = _patch_proj(patches, w_bf, b_f32, E)  # (M, E)
    return out.reshape(B, N, E)


def _apply_mask(tokens, mask):
    """tokens: (B, N, E); mask: (B, keep) int32 -> (B, keep, E)."""
    E = tokens.shape[-1]
    idx = jnp.broadcast_to(mask[:, :, None], mask.shape + (E,))
    return jnp.take_along_axis(tokens, idx, axis=1)


class PallasPatchEmbedBackbone:
    """Patch-embed backbone with explicit embed / apply_mask entry points."""

    def __init__(self, weight, bias, *, patch_size, tubelet_size):
        E = weight.shape[0]
        K = int(np.prod(weight.shape[1:]))
        Kp = _round_up(K, 128)
        Ep = _round_up(E, 128)

        # One-time weight reshape + pad + bf16 cast (outside the jitted path).
        w_ke = weight.reshape(E, -1).T                              # (K, E)
        self.w_bf = jnp.pad(w_ke, ((0, Kp - K), (0, Ep - E))).astype(jnp.bfloat16)
        self.b_f32 = jnp.pad(bias.astype(jnp.float32), (0, Ep - E)).reshape(1, Ep)
        self.embed_dim = E

        self._embed = jax.jit(
            lambda x, w, b: _patch_embed_tokens(
                x, w, b, E, patch_size=patch_size, tubelet_size=tubelet_size
            )
        )
        self._gather = jax.jit(_apply_mask)

    def embed(self, x):
        return self._embed(x, self.w_bf, self.b_f32)

    def apply_mask(self, tokens, mask):
        return self._gather(tokens, mask)

    def __call__(self, x, masks=None):
        tokens = self.embed(x)
        if masks is None:
            return tokens
        return self.apply_mask(tokens, masks)


# ----------------------------------------------------------------------------
# MultiMaskWrapper — same forward semantics as the PyTorch module, but the
# patch-embed GEMM runs once per input and only the gather repeats per mask.
# ----------------------------------------------------------------------------
class MultiMaskWrapper:
    def __init__(self, backbone):
        self.backbone = backbone

    def __call__(self, x, masks=None):
        if masks is None:
            return self.backbone(x)
        if masks is not None and (not isinstance(masks, (list, tuple))):
            masks = [masks]
        # Compute tokens once; gather per mask (token-wise embed => identical
        # result to calling backbone(x, masks=m) per mask).
        # TODO(synk): for small keep fractions, scalar-prefetch the mask and
        # row-gather inside the Pallas kernel so only kept tokens are projected.
        tokens = self.backbone.embed(x)
        outs = []
        for m in masks:
            outs += [self.backbone.apply_mask(tokens, m)]
        return outs


# ----------------------------------------------------------------------------
# Reference (plain JAX, f32 conv) for verification
# ----------------------------------------------------------------------------
def patch_embed_3d_ref(x, weight, bias, *, patch_size, tubelet_size):
    out = jax.lax.conv_general_dilated(
        x, weight,
        window_strides=(tubelet_size, patch_size, patch_size),
        padding="VALID",
        dimension_numbers=("NCDHW", "OIDHW", "NCDHW"),
        precision=jax.lax.Precision.HIGHEST,
    ) + bias.reshape(1, -1, 1, 1, 1)
    B, E = out.shape[0], out.shape[1]
    return jnp.transpose(out.reshape(B, E, -1), (0, 2, 1))


if __name__ == "__main__":
    # Small shapes consistent with the module: B=2, C=3, T=4, H=W=16,
    # patch=8, tubelet=2, embed_dim=32 -> N = 2*2*2 = 8, K = 3*2*8*8 = 384.
    B, C, T, H, W = 2, 3, 4, 16, 16
    patch_size, tubelet_size, embed_dim = 8, 2, 32

    key = jax.random.PRNGKey(0)
    kx, kw, kb, km1, km2 = jax.random.split(key, 5)

    x = jax.random.normal(kx, (B, C, T, H, W), dtype=jnp.float32)

    fan_in = C * tubelet_size * patch_size * patch_size
    bound = 1.0 / (fan_in ** 0.5)
    weight = jax.random.uniform(
        kw, (embed_dim, C, tubelet_size, patch_size, patch_size),
        minval=-bound, maxval=bound, dtype=jnp.float32)
    bias = jax.random.uniform(
        kb, (embed_dim,), minval=-bound, maxval=bound, dtype=jnp.float32)

    backbone = PallasPatchEmbedBackbone(
        weight, bias, patch_size=patch_size, tubelet_size=tubelet_size)
    wrapper = MultiMaskWrapper(backbone)

    N = (T // tubelet_size) * (H // patch_size) * (W // patch_size)

    # --- no-mask path -------------------------------------------------------
    out = jax.block_until_ready(wrapper(x))
    assert out.shape == (B, N, embed_dim)

    # Loose check against the f32 conv reference (kernel uses bf16 operands).
    ref = patch_embed_3d_ref(
        x, weight, bias, patch_size=patch_size, tubelet_size=tubelet_size)
    assert jnp.allclose(out, ref, atol=3e-2, rtol=3e-2), float(
        jnp.max(jnp.abs(out - ref)))

    # Tight check against a numpy reference using the same bf16-cast operands.
    Tp, Hp, Wp = T // tubelet_size, H // patch_size, W // patch_size
    xr_np = np.asarray(x).reshape(
        B, C, Tp, tubelet_size, Hp, patch_size, Wp, patch_size)
    xr_np = xr_np.transpose(0, 2, 4, 6, 1, 3, 5, 7).reshape(B * N, fan_in)
    p_bf = np.asarray(jnp.asarray(xr_np).astype(jnp.bfloat16).astype(jnp.float32))
    w_ke = weight.reshape(embed_dim, -1).T
    w_bf = np.asarray(jnp.asarray(w_ke).astype(jnp.bfloat16).astype(jnp.float32))
    tight = (p_bf @ w_bf + np.asarray(bias)[None, :]).reshape(B, N, embed_dim)
    assert np.allclose(np.asarray(out), tight, atol=2e-3, rtol=2e-3), float(
        np.max(np.abs(np.asarray(out) - tight)))

    # --- multi-mask path ----------------------------------------------------
    keep = 4
    m1 = jax.random.randint(km1, (B, keep), 0, N, dtype=jnp.int32)
    m2 = jax.random.randint(km2, (B, keep), 0, N, dtype=jnp.int32)

    outs = wrapper(x, masks=[m1, m2])
    outs = [jax.block_until_ready(o) for o in outs]
    assert isinstance(outs, list) and len(outs) == 2
    for m, o in zip([m1, m2], outs):
        assert o.shape == (B, keep, embed_dim)
        exp = jnp.take_along_axis(
            out, jnp.broadcast_to(m[:, :, None], (B, keep, embed_dim)), axis=1)
        assert jnp.allclose(o, exp, atol=1e-5, rtol=1e-5)

    # --- single (non-list) mask path ----------------------------------------
    single = wrapper(x, masks=m1)
    single = [jax.block_until_ready(o) for o in single]
    assert isinstance(single, list) and len(single) == 1
    assert single[0].shape == (B, keep, embed_dim)

    print("KERNEL_OK")
</pallas_src>

<mosaic_0001>
module attributes {stable_mosaic.version = 11 : i64} {
  func.func @_patch_proj_kernel(%arg0: i32, %arg1: memref<16x384xbf16, #tpu.memory_space<vmem>>, %arg2: memref<384x128xbf16, #tpu.memory_space<vmem>>, %arg3: memref<1x128xf32, #tpu.memory_space<vmem>>, %arg4: memref<16x128xf32, #tpu.memory_space<vmem>>) attributes {dimension_semantics = [#tpu.dimension_semantics<parallel>], iteration_bounds = array<i64: 1>, scalar_prefetch = 0 : i64, scratch_operands = 0 : i64, tpu.core_type = #tpu.core_type<tc>, window_params = [{transform_indices = @transform_0, window_bounds = array<i64: 16, 384>}, {pipeline_mode = #tpu.pipeline_mode<synchronous>, transform_indices = @transform_1, window_bounds = array<i64: 384, 128>}, {pipeline_mode = #tpu.pipeline_mode<synchronous>, transform_indices = @transform_2, window_bounds = array<i64: 1, 128>}, {transform_indices = @transform_3, window_bounds = array<i64: 16, 128>}]} {
    %c0 = arith.constant 0 : index
    %c0_0 = arith.constant 0 : index
    %0 = vector.load %arg1[%c0, %c0_0] : memref<16x384xbf16, #tpu.memory_space<vmem>>, vector<16x384xbf16>
    %c0_1 = arith.constant 0 : index
    %c0_2 = arith.constant 0 : index
    %1 = vector.load %arg2[%c0_1, %c0_2] : memref<384x128xbf16, #tpu.memory_space<vmem>>, vector<384x128xbf16>
    %cst = arith.constant dense<0.000000e+00> : vector<16x128xf32>
    %2 = tpu.matmul %0, %1, %cst {dimension_numbers = #tpu.dot_dimension_numbers<[1], [0], [0], [1], [0, 0, 1, 1], [], []>} : vector<16x384xbf16>, vector<384x128xbf16>, vector<16x128xf32> -> vector<16x128xf32>
    %c0_3 = arith.constant 0 : index
    %c0_4 = arith.constant 0 : index
    %3 = vector.load %arg3[%c0_3, %c0_4] : memref<1x128xf32, #tpu.memory_space<vmem>>, vector<1x128xf32>
    %4 = vector.broadcast %3 : vector<1x128xf32> to vector<16x128xf32>
    %5 = arith.addf %2, %4 : vector<16x128xf32>
    %c0_5 = arith.constant 0 : index
    %c0_6 = arith.constant 0 : index
    %6 = vector.load %arg4[%c0_5, %c0_6] : memref<16x128xf32, #tpu.memory_space<vmem>>, vector<16x128xf32>
    tpu.vector_store %arg4[%c0_5, %c0_6], %5 {strides = array<i32>} : memref<16x128xf32, #tpu.memory_space<vmem>>, vector<16x128xf32>,
    return
  }
  func.func @transform_0(%arg0: i32) -> (i32, i32) {
    %c0_i32 = arith.constant 0 : i32
    %c0_i32_0 = arith.constant 0 : i32
    return %arg0, %c0_i32 : i32, i32
  }
  func.func @transform_1(%arg0: i32) -> (i32, i32) {
    %c0_i32 = arith.constant 0 : i32
    %c0_i32_0 = arith.constant 0 : i32
    %c0_i32_1 = arith.constant 0 : i32
    return %c0_i32, %c0_i32_0 : i32, i32
  }
  func.func @transform_2(%arg0: i32) -> (i32, i32) {
    %c0_i32 = arith.constant 0 : i32
    %c0_i32_0 = arith.constant 0 : i32
    %c0_i32_1 = arith.constant 0 : i32
    return %c0_i32, %c0_i32_0 : i32, i32
  }
  func.func @transform_3(%arg0: i32) -> (i32, i32) {
    %c0_i32 = arith.constant 0 : i32
    %c0_i32_0 = arith.constant 0 : i32
    return %arg0, %c0_i32 : i32, i32
  }
}

</mosaic_0001>

<llo_original>
// kernel: _lambda_.1
$region0: #{_lambda_.1}
  #allocation0 [shape = 'u32[]', space=smem, size = 0x4, offset = 0x4, fixed_abs, tag = 'smem constant byte address 0x4 - core index']
  #allocation1 [shape = 'u32[144,128]{1,0:T(1,128)}', space=vmem, size = 0x12000, scoped, tag = 'internal scratch']
  %s0 = inlined_call_operand.vmem [shape: bf16[16,384], index: 0, kind: input, shape index: {}]
  %s1 = inlined_call_operand.vmem [shape: bf16[384,128], index: 1, kind: input, shape index: {}]
  %s2 = inlined_call_operand.vmem [shape: f32[1,128], index: 2, kind: input, shape index: {}]
  %s3 = inlined_call_operand.vmem [shape: f32[16,128], index: 3, kind: output, shape index: {}]
  %s4 = sld [smem:[#allocation0]]
  $region22: #{_lambda_.1} parent=0
    _
  %s6 = ssub.s32 1, %s4
  %s7 = scalar_select 0, %s6, %s4
  // Predicated region
  $region2: #{_lambda_.1} parent=0 // pred_check
    _
  $region3: #{_lambda_.1} parent=0 // pred_check_branch
    %9 = sbr.rel (0) target = $region5
  $region4: #{_lambda_.1} parent=0 // pred_region
    _
  $region5: #{_lambda_.1} parent=0 // pred_fallthru
    _
  // Predicated region
  $region6: #{_lambda_.1} parent=0 // pred_check
    _
  $region7: #{_lambda_.1} parent=0 // pred_check_branch
    %11 = sbr.rel (0) target = $region9
  $region8: #{_lambda_.1} parent=0 // pred_region
    _
  $region9: #{_lambda_.1} parent=0 // pred_fallthru
    _
  // Predicated region
  $region10: #{_lambda_.1} parent=0 // pred_check
    _
  $region11: #{_lambda_.1} parent=0 // pred_check_branch
    %13 = sbr.rel (0) target = $region13
  $region12: #{_lambda_.1} parent=0 // pred_region
    _
  $region13: #{_lambda_.1} parent=0 // pred_fallthru
    _
  %v15 = vld [vmem:[%s0] sm:$0xff]
  %v16 = vld [vmem:[%s0 + $0x8] sm:$0xf]
  %v17 = vld [vmem:[%s0 + $0xc] sm:$0xff]
  %v18 = vld [vmem:[%s0 + $0x14] sm:$0xf]
  %v19 = vld [vmem:[%s1] sm:$0xf]
  %v20 = vld [vmem:[%s1 + $0x4] sm:$0xf]
  %v21 = vld [vmem:[%s1 + $0x8] sm:$0xf]
  %v22 = vld [vmem:[%s1 + $0xc] sm:$0xf]
  %v23 = vld [vmem:[%s1 + $0x10] sm:$0xf]
  %v24 = vld [vmem:[%s1 + $0x14] sm:$0xf]
  %v25 = vld [vmem:[%s1 + $0x18] sm:$0xf]
  %v26 = vld [vmem:[%s1 + $0x1c] sm:$0xf]
  %v27 = vld [vmem:[%s1 + $0x20] sm:$0xf]
  %v28 = vld [vmem:[%s1 + $0x24] sm:$0xf]
  %v29 = vld [vmem:[%s1 + $0x28] sm:$0xf]
  %v30 = vld [vmem:[%s1 + $0x2c] sm:$0xf]
  %v31 = vld [vmem:[%s1 + $0x30] sm:$0xf]
  %v32 = vld [vmem:[%s1 + $0x34] sm:$0xf]
  %v33 = vld [vmem:[%s1 + $0x38] sm:$0xf]
  %v34 = vld [vmem:[%s1 + $0x3c] sm:$0xf]
  %v35 = vld [vmem:[%s1 + $0x40] sm:$0xf]
  %v36 = vld [vmem:[%s1 + $0x44] sm:$0xf]
  %v37 = vld [vmem:[%s1 + $0x48] sm:$0xf]
  %v38 = vld [vmem:[%s1 + $0x4c] sm:$0xf]
  %v39 = vld [vmem:[%s1 + $0x50] sm:$0xf]
  %v40 = vld [vmem:[%s1 + $0x54] sm:$0xf]
  %v41 = vld [vmem:[%s1 + $0x58] sm:$0xf]
  %v42 = vld [vmem:[%s1 + $0x5c] sm:$0xf]
  %v43 = vld [vmem:[%s1 + $0x60] sm:$0xf]
  %v44 = vld [vmem:[%s1 + $0x64] sm:$0xf]
  %v45 = vld [vmem:[%s1 + $0x68] sm:$0xf]
  %v46 = vld [vmem:[%s1 + $0x6c] sm:$0xf]
  %v47 = vld [vmem:[%s1 + $0x70] sm:$0xf]
  %v48 = vld [vmem:[%s1 + $0x74] sm:$0xf]
  %v49 = vld [vmem:[%s1 + $0x78] sm:$0xf]
  %v50 = vld [vmem:[%s1 + $0x7c] sm:$0xf]
  %v51 = vld [vmem:[%s1 + $0x80] sm:$0xf]
  %v52 = vld [vmem:[%s1 + $0x84] sm:$0xf]
  %v53 = vld [vmem:[%s1 + $0x88] sm:$0xf]
  %v54 = vld [vmem:[%s1 + $0x8c] sm:$0xf]
  %v55 = vld [vmem:[%s1 + $0x90] sm:$0xf]
  %v56 = vld [vmem:[%s1 + $0x94] sm:$0xf]
  %v57 = vld [vmem:[%s1 + $0x98] sm:$0xf]
  %v58 = vld [vmem:[%s1 + $0x9c] sm:$0xf]
  %v59 = vld [vmem:[%s1 + $0xa0] sm:$0xf]
  %v60 = vld [vmem:[%s1 + $0xa4] sm:$0xf]
  %v61 = vld [vmem:[%s1 + $0xa8] sm:$0xf]
  %v62 = vld [vmem:[%s1 + $0xac] sm:$0xf]
  %v63 = vld [vmem:[%s1 + $0xb0] sm:$0xf]
  %v64 = vld [vmem:[%s1 + $0xb4] sm:$0xf]
  %v65 = vld [vmem:[%s1 + $0xb8] sm:$0xf]
  %v66 = vld [vmem:[%s1 + $0xbc] sm:$0xf]
  %v67 = vld [vmem:[%s2] sm:$0x1]
  %v69 = vlaneseq
  %v70 = vshrl.u32 %v69, 7
  %v71 = vsub.s32 0, %v70
  %v72 = vrot.slane %v67, %v71
  %v78 = vunpack.c.l.b16 %v15
  %v79 = vunpack.c.h.b16 %v15
  %v80 = vunpack.c.l.b16 %v16
  %v81 = vunpack.c.l.b16 %v17
  %v82 = vunpack.c.h.b16 %v17
  %v83 = vunpack.c.l.b16 %v18
  %v84 = vpack.c.b16 %v81, %v78
  %v85 = vpack.c.b16 %v82, %v79
  %v86 = vpack.c.b16 %v83, %v80
  %v138 = vunpack.c.l.b16 %v19
  %v139 = vunpack.c.l.b16 %v20
  %v140 = vunpack.c.l.b16 %v21
  %v141 = vunpack.c.l.b16 %v22
  %v142 = vunpack.c.l.b16 %v23
  %v143 = vunpack.c.l.b16 %v24
  %v144 = vunpack.c.l.b16 %v25
  %v145 = vunpack.c.l.b16 %v26
  %v146 = vunpack.c.l.b16 %v27
  %v147 = vunpack.c.l.b16 %v28
  %v148 = vunpack.c.l.b16 %v29
  %v149 = vunpack.c.l.b16 %v30
  %v150 = vunpack.c.l.b16 %v31
  %v151 = vunpack.c.l.b16 %v32
  %v152 = vunpack.c.l.b16 %v33
  %v153 = vunpack.c.l.b16 %v34
  %v154 = vunpack.c.l.b16 %v35
  %v155 = vunpack.c.l.b16 %v36
  %v156 = vunpack.c.l.b16 %v37
  %v157 = vunpack.c.l.b16 %v38
  %v158 = vunpack.c.l.b16 %v39
  %v159 = vunpack.c.l.b16 %v40
  %v160 = vunpack.c.l.b16 %v41
  %v161 = vunpack.c.l.b16 %v42
  %v162 = vunpack.c.l.b16 %v43
  %v163 = vunpack.c.l.b16 %v44
  %v164 = vunpack.c.l.b16 %v45
  %v165 = vunpack.c.l.b16 %v46
  %v166 = vunpack.c.l.b16 %v47
  %v167 = vunpack.c.l.b16 %v48
  %v168 = vunpack.c.l.b16 %v49
  %v169 = vunpack.c.l.b16 %v50
  %v170 = vunpack.c.l.b16 %v51
  %v171 = vunpack.c.l.b16 %v52
  %v172 = vunpack.c.l.b16 %v53
  %v173 = vunpack.c.l.b16 %v54
  %v174 = vunpack.c.l.b16 %v55
  %v175 = vunpack.c.l.b16 %v56
  %v176 = vunpack.c.l.b16 %v57
  %v177 = vunpack.c.l.b16 %v58
  %v178 = vunpack.c.l.b16 %v59
  %v179 = vunpack.c.l.b16 %v60
  %v180 = vunpack.c.l.b16 %v61
  %v181 = vunpack.c.l.b16 %v62
  %v182 = vunpack.c.l.b16 %v63
  %v183 = vunpack.c.l.b16 %v64
  %v184 = vunpack.c.l.b16 %v65
  %v185 = vunpack.c.l.b16 %v66
  %v186 = vpack.c.b16 %v139, %v138
  %v187 = vpack.c.b16 %v141, %v140
  %v188 = vpack.c.b16 %v143, %v142
  %v189 = vpack.c.b16 %v145, %v144
  %v190 = vpack.c.b16 %v147, %v146
  %v191 = vpack.c.b16 %v149, %v148
  %v192 = vpack.c.b16 %v151, %v150
  %v193 = vpack.c.b16 %v153, %v152
  %v194 = vpack.c.b16 %v155, %v154
  %v195 = vpack.c.b16 %v157, %v156
  %v196 = vpack.c.b16 %v159, %v158
  %v197 = vpack.c.b16 %v161, %v160
  %v198 = vpack.c.b16 %v163, %v162
  %v199 = vpack.c.b16 %v165, %v164
  %v200 = vpack.c.b16 %v167, %v166
  %v201 = vpack.c.b16 %v169, %v168
  %v202 = vpack.c.b16 %v171, %v170
  %v203 = vpack.c.b16 %v173, %v172
  %v204 = vpack.c.b16 %v175, %v174
  %v205 = vpack.c.b16 %v177, %v176
  %v206 = vpack.c.b16 %v179, %v178
  %v207 = vpack.c.b16 %v181, %v180
  %v208 = vpack.c.b16 %v183, %v182
  %v209 = vpack.c.b16 %v185, %v184
  %234 = vmatprep.subr.bf16.mxu0 0
  %235 = vmatpush1.bf16.msra.mxu0 %v186
  %236 = vmatprep.subr.bf16.mxu0 0
  %237 = vmatpush1.bf16.msra.mxu0 %v187
  %238 = vmatprep.subr.bf16.mxu0 0
  %239 = vmatpush1.bf16.msra.mxu0 %v188
  %240 = vmatprep.subr.bf16.mxu0 0
  %241 = vmatpush1.bf16.msra.mxu0 %v189
  %242 = vmatprep.subr.bf16.mxu0 0
  %243 = vmatpush1.bf16.msra.mxu0 %v190
  %244 = vmatprep.subr.bf16.mxu0 0
  %245 = vmatpush1.bf16.msra.mxu0 %v191
  %246 = vmatprep.subr.bf16.mxu0 0
  %247 = vmatpush1.bf16.msra.mxu0 %v192
  %248 = vmatprep.subr.bf16.mxu0 0
  %249 = vmatpush1.bf16.msra.mxu0 %v193
  %250 = vmatprep.subr.bf16.mxu0 0
  %251 = vmatpush1.bf16.msra.mxu0 %v194
  %252 = vmatprep.subr.bf16.mxu0 0
  %253 = vmatpush1.bf16.msra.mxu0 %v195
  %254 = vmatprep.subr.bf16.mxu0 0
  %255 = vmatpush1.bf16.msra.mxu0 %v196
  %256 = vmatprep.subr.bf16.mxu0 0
  %257 = vmatpush1.bf16.msra.mxu0 %v197
  %258 = vmatprep.subr.bf16.mxu0 0
  %259 = vmatpush1.bf16.msra.mxu0 %v198
  %260 = vmatprep.subr.bf16.mxu0 0
  %261 = vmatpush1.bf16.msra.mxu0 %v199
  %262 = vmatprep.subr.bf16.mxu0 0
  %263 = vmatpush1.bf16.msra.mxu0 %v200
  %264 = vmatprep.subr.bf16.mxu0 0
  %265 = vmatpush1.bf16.msra.mxu0 %v201
  %266 = vmatprep.mubr.bf16.mxu0 %v85
  %267 = vmatmul.mubr.bf16.gmra.mrb[0].mxu0 %v84
  %v268 = vpop.f32.mrb[0].mxu0
  %v269 = vadd.f32 %v72, %v268
  %v270 = vpop.f32.mrb[0].mxu0
  %v271 = vpop.f32.mrb[0].mxu0
  %v272 = vadd.f32 %v72, %v271
  %v273 = vpop.f32.mrb[0].mxu0
  %274 = vdwg.mxu0
  %275 = vmatprep.subr.bf16.mxu0 0
  %276 = vmatpush1.bf16.msra.mxu0 %v202
  %277 = vmatprep.subr.bf16.mxu0 0
  %278 = vmatpush1.bf16.msra.mxu0 %v203
  %279 = vmatprep.subr.bf16.mxu0 0
  %280 = vmatpush1.bf16.msra.mxu0 %v204
  %281 = vmatprep.subr.bf16.mxu0 0
  %282 = vmatpush1.bf16.msra.mxu0 %v205
  %283 = vmatprep.subr.bf16.mxu0 0
  %284 = vmatpush1.bf16.msra.mxu0 %v206
  %285 = vmatprep.subr.bf16.mxu0 0
  %286 = vmatpush1.bf16.msra.mxu0 %v207
  %287 = vmatprep.subr.bf16.mxu0 0
  %288 = vmatpush1.bf16.msra.mxu0 %v208
  %289 = vmatprep.subr.bf16.mxu0 0
  %290 = vmatpush1.bf16.msra.mxu0 %v209
  %291 = vmatprep.subr.bf16.mxu0 0
  %292 = vmatpush1.bf16.msra.mxu0 0
  %293 = vmatprep.subr.bf16.mxu0 0
  %294 = vmatpush1.bf16.msra.mxu0 0
  %295 = vmatprep.subr.bf16.mxu0 0
  %296 = vmatpush1.bf16.msra.mxu0 0
  %297 = vmatprep.subr.bf16.mxu0 0
  %298 = vmatpush1.bf16.msra.mxu0 0
  %299 = vmatprep.subr.bf16.mxu0 0
  %300 = vmatpush1.bf16.msra.mxu0 0
  %301 = vmatprep.subr.bf16.mxu0 0
  %302 = vmatpush1.bf16.msra.mxu0 0
  %303 = vmatprep.subr.bf16.mxu0 0
  %304 = vmatpush1.bf16.msra.mxu0 0
  %305 = vmatprep.subr.bf16.mxu0 0
  %306 = vmatpush1.bf16.msra.mxu0 0
  %307 = vmatprep.mubr.bf16.mxu0 0
  %308 = vmatmul.mubr.bf16.gmra.mrb[0].mxu0 %v86
  %v309 = vpop.f32.mrb[0].mxu0
  %v310 = vadd.f32 %v269, %v309
  %v311 = vpop.f32.mrb[0].mxu0
  %v312 = vpop.f32.mrb[0].mxu0
  %v313 = vadd.f32 %v272, %v312
  %v314 = vpop.f32.mrb[0].mxu0
  %315 = vdwg.mxu0
  %316 = vst [vmem:[%s3] sm:$0xff] %v310
  %317 = vst [vmem:[%s3 + $0x8] sm:$0xff] %v313
  // Predicated region
  $region14: #{_lambda_.1} parent=0 // pred_check
    _
  $region15: #{_lambda_.1} parent=0 // pred_check_branch
    %319 = sbr.rel (0) target = $region17
  $region16: #{_lambda_.1} parent=0 // pred_region
    _
  $region17: #{_lambda_.1} parent=0 // pred_fallthru
    _
  // Predicated region
  $region18: #{_lambda_.1} parent=0 // pred_check
    _
  $region19: #{_lambda_.1} parent=0 // pred_check_branch
    %321 = sbr.rel (0) target = $region21
  $region20: #{_lambda_.1} parent=0 // pred_region
    _
  $region21: #{_lambda_.1} parent=0 // pred_fallthru
    _

</llo_original>
